<compile_context>
chip_gen: v5e
topology: v5e:2x2
jax: 0.10.0
libtpu: 0.0.40
codegen_flags: <defaults>
</compile_context>

<pallas_src>
import functools

import jax
import jax.numpy as jnp
from jax import lax
from jax.experimental import pallas as pl
from jax.experimental.pallas import tpu as pltpu

LN_EPS = 1e-5                       # torch.nn.LayerNorm default
MLP_CHUNK = 512                     # hidden-dim chunk in the fused MLP


# ----------------------------- small helpers -------------------------------
@functools.lru_cache(maxsize=None)
def _vmem_limit_bytes():
    """Per-generation VMEM budget: ~75% of physical, capped at 100 MiB."""
    try:
        cap = getattr(pltpu.get_tpu_info(), "vmem_capacity_bytes", None)
        if cap:
            return max(32 << 20, min(100 << 20, (int(cap) * 3) // 4))
    except Exception:
        pass
    return 48 << 20                 # safe default (fits v7x's 64 MiB physical)


def _layernorm(x, gamma, beta):
    mu = jnp.mean(x, axis=-1, keepdims=True)
    var = jnp.mean((x - mu) ** 2, axis=-1, keepdims=True)
    return (x - mu) * lax.rsqrt(var + LN_EPS) * gamma + beta


def _seq_tile(S):
    # (8,128)-friendly sequence tile: 128-row tiles when possible, else full extent.
    return 128 if S % 128 == 0 else S


def _head_group(num_heads, head_dim):
    """Largest divisor g of num_heads with g*head_dim <= 128 (lane-dense groups)."""
    g = 1
    for cand in range(1, num_heads + 1):
        if num_heads % cand == 0 and cand * head_dim <= 128:
            g = cand
    return g


# ------------------------------ Pallas kernels -----------------------------
def _ln1_qkv_kernel(n_groups, group_dim, has_pos, *refs):
    i = 0
    x_ref = refs[i]; i += 1
    pos_ref = None
    if has_pos:
        pos_ref = refs[i]; i += 1
    g1_ref, b1_ref, wqkv_ref, bqkv_ref, qkv_ref = refs[i:i + 5]

    x = x_ref[0].astype(jnp.float32)                          # (TS, D) f32
    if has_pos:
        x = x + pos_ref[0]
    xn = _layernorm(x, g1_ref[0], b1_ref[0])                  # f32 stats

    # fused QKV projection: bf16 inputs, f32 accumulation, f32 bias add
    qkv = jnp.dot(xn.astype(jnp.bfloat16), wqkv_ref[...],
                  preferred_element_type=jnp.float32) + bqkv_ref[0]     # (TS, 3D) f32
    qkv = qkv.astype(jnp.bfloat16)

    # Lane-dense head-GROUP-major writes: slab layout is [Q(D) | K(D) | V(D)],
    # D = n_groups * group_dim, so slice j covers (Q|K|V) group (j % n_groups)
    # and every slice starts on a group_dim (~128)-lane-aligned offset.
    for j in range(3 * n_groups):
        qkv_ref[0, j, :, :] = qkv[:, j * group_dim:(j + 1) * group_dim]


def _attn_mlp_kernel(n_groups, group_size, head_dim, has_pos, has_final, *refs):
    i = 0
    x_ref = refs[i]; i += 1
    pos_ref = None
    if has_pos:
        pos_ref = refs[i]; i += 1
    q_ref, k_ref, v_ref = refs[i:i + 3]; i += 3
    wog_ref, bo_ref, g2_ref, b2_ref = refs[i:i + 4]; i += 4
    w1_ref, bb1_ref, w2_ref, bb2_ref = refs[i:i + 4]; i += 4
    gf_ref = bf_ref = None
    if has_final:
        gf_ref, bf_ref = refs[i:i + 2]; i += 2
    o_ref = refs[i]; i += 1
    acc_ref = refs[i]

    gi = pl.program_id(2)

    @pl.when(gi == 0)
    def _init():
        acc_ref[...] = jnp.zeros_like(acc_ref)

    q = q_ref[0, 0, :, :]                                     # (TQ, g*Hd) bf16, scale folded
    k = k_ref[0, 0, :, :]                                     # (S,  g*Hd) bf16
    v = v_ref[0, 0, :, :]                                     # (S,  g*Hd) bf16

    # per-head attention inside the group (f32 accumulation on the MXU)
    attns = []
    for hh in range(group_size):
        sl = slice(hh * head_dim, (hh + 1) * head_dim)
        s = lax.dot_general(q[:, sl], k[:, sl], (((1,), (1,)), ((), ())),
                            preferred_element_type=jnp.float32)        # (TQ, S)
        s = s - jnp.max(s, axis=-1, keepdims=True)            # f32 softmax stats
        p = jnp.exp(s)
        p = p * pl.reciprocal(jnp.sum(p, axis=-1, keepdims=True), approx=True)
        attns.append(jnp.dot(p.astype(jnp.bfloat16), v[:, sl],
                             preferred_element_type=jnp.float32))      # (TQ, Hd)
    attn = attns[0] if group_size == 1 else jnp.concatenate(attns, axis=-1)  # (TQ, g*Hd)

    # ONE lane-dense output-projection matmul per group (g*Hd-deep contraction),
    # accumulated over the group grid axis
    acc_ref[...] += jnp.dot(attn.astype(jnp.bfloat16), wog_ref[...],
                            preferred_element_type=jnp.float32)         # (TQ, D)

    @pl.when(gi == n_groups - 1)
    def _finalize():
        x = x_ref[0].astype(jnp.float32)
        if has_pos:
            x = x + pos_ref[0]
        x2 = x + acc_ref[...] + bo_ref[0]                     # residual 1 (f32)
        xn2 = _layernorm(x2, g2_ref[0], b2_ref[0]).astype(jnp.bfloat16)

        # MLP with the hidden dim chunked to bound the live (TQ, M) f32 intermediate
        M = w1_ref.shape[1]
        mc = MLP_CHUNK if (M % MLP_CHUNK == 0 and M > MLP_CHUNK) else M
        y = x2 + bb2_ref[0]                                   # fold fc2 bias into residual 2
        for c in range(0, M, mc):
            h1 = jnp.dot(xn2, w1_ref[:, c:c + mc],
                         preferred_element_type=jnp.float32) + bb1_ref[0, c:c + mc]
            h1 = jax.nn.gelu(h1, approximate=False)           # == torch.nn.GELU()
            y = y + jnp.dot(h1.astype(jnp.bfloat16), w2_ref[c:c + mc, :],
                            preferred_element_type=jnp.float32)
        if has_final:
            y = _layernorm(y, gf_ref[0], bf_ref[0])           # fused final LayerNorm
        o_ref[0] = y.astype(o_ref.dtype)


# ------------------------------ JAX wrappers --------------------------------
def ln1_qkv(x, lp, num_heads, pos=None):
    B, S, D = x.shape
    Hd = D // num_heads
    g = _head_group(num_heads, Hd)
    G = num_heads // g
    GHd = g * Hd
    TS = _seq_tile(S)
    NS = S // TS
    kernel = functools.partial(_ln1_qkv_kernel, G, GHd, pos is not None)

    in_specs = [pl.BlockSpec((1, TS, D), lambda b, s: (b, s, 0))]
    inputs = [x]
    if pos is not None:
        in_specs.append(pl.BlockSpec((1, TS, D), lambda b, s: (0, s, 0)))
        inputs.append(pos)
    in_specs += [
        pl.BlockSpec((1, D), lambda b, s: (0, 0)),            # ln1 gamma
        pl.BlockSpec((1, D), lambda b, s: (0, 0)),            # ln1 beta
        pl.BlockSpec((D, 3 * D), lambda b, s: (0, 0)),        # fused Wqkv (bf16)
        pl.BlockSpec((1, 3 * D), lambda b, s: (0, 0)),        # fused bqkv (f32)
    ]
    inputs += [lp["g1"], lp["b1"], lp["w_qkv"], lp["b_qkv"]]

    flops = 2 * B * S * D * 3 * D + 10 * B * S * D
    bytes_accessed = (B * S * D * 4 + 3 * B * S * D * 2 + D * 3 * D * 2 + 8 * D * 4)
    return pl.pallas_call(
        kernel,
        out_shape=jax.ShapeDtypeStruct((B, 3 * G, S, GHd), jnp.bfloat16),
        grid=(B, NS),
        in_specs=in_specs,
        out_specs=pl.BlockSpec((1, 3 * G, TS, GHd), lambda b, s: (b, 0, s, 0)),
        compiler_params=pltpu.CompilerParams(
            dimension_semantics=("parallel", "parallel"),
            vmem_limit_bytes=_vmem_limit_bytes()),
        cost_estimate=pl.CostEstimate(flops=flops, transcendentals=B * S,
                                      bytes_accessed=bytes_accessed),
    )(*inputs)


def attn_mlp(x, qkv, lp, num_heads, pos=None, final_ln=None):
    B, S, D = x.shape
    Hd = D // num_heads
    g = _head_group(num_heads, Hd)
    G = num_heads // g
    GHd = g * Hd
    M = lp["w1"].shape[1]
    TQ = _seq_tile(S)
    NQ = S // TQ
    kernel = functools.partial(_attn_mlp_kernel, G, g, Hd,
                               pos is not None, final_ln is not None)

    def vec(n):
        return pl.BlockSpec((1, n), lambda b, qi, h: (0, 0))

    in_specs = [pl.BlockSpec((1, TQ, D), lambda b, qi, h: (b, qi, 0))]
    inputs = [x]
    if pos is not None:
        in_specs.append(pl.BlockSpec((1, TQ, D), lambda b, qi, h: (0, qi, 0)))
        inputs.append(pos)
    in_specs += [
        pl.BlockSpec((1, 1, TQ, GHd), lambda b, qi, h: (b, h, qi, 0)),          # Q group h
        pl.BlockSpec((1, 1, S, GHd), lambda b, qi, h: (b, G + h, 0, 0)),        # K group h
        pl.BlockSpec((1, 1, S, GHd), lambda b, qi, h: (b, 2 * G + h, 0, 0)),    # V group h
        pl.BlockSpec((GHd, D), lambda b, qi, h: (h, 0)),                        # Wo rows of group h
        vec(D),                                                                 # bo
        vec(D), vec(D),                                                         # ln2 gamma/beta
        pl.BlockSpec((D, M), lambda b, qi, h: (0, 0)),                          # fc1 W (bf16)
        vec(M),                                                                 # fc1 b
        pl.BlockSpec((M, D), lambda b, qi, h: (0, 0)),                          # fc2 W (bf16)
        vec(D),                                                                 # fc2 b
    ]
    inputs += [qkv, qkv, qkv, lp["wo"], lp["bo"], lp["g2"], lp["b2"],
               lp["w1"], lp["bb1"], lp["w2"], lp["bb2"]]
    if final_ln is not None:
        in_specs += [vec(D), vec(D)]                                            # final LN gamma/beta
        inputs += [final_ln[0], final_ln[1]]

    flops = 2 * B * S * (2 * S * D + D * D + 2 * D * M)
    transc = B * num_heads * S * S + B * S * M
    bytes_accessed = (2 * B * S * D * 4 + 3 * B * S * D * 2
                      + (D * D + 2 * D * M) * 2 + (4 * D + M) * 4)
    return pl.pallas_call(
        kernel,
        out_shape=jax.ShapeDtypeStruct((B, S, D), x.dtype),
        grid=(B, NQ, G),
        in_specs=in_specs,
        out_specs=pl.BlockSpec((1, TQ, D), lambda b, qi, h: (b, qi, 0)),
        scratch_shapes=[pltpu.VMEM((TQ, D), jnp.float32)],
        compiler_params=pltpu.CompilerParams(
            dimension_semantics=("parallel", "parallel", "arbitrary"),
            vmem_limit_bytes=_vmem_limit_bytes()),
        cost_estimate=pl.CostEstimate(flops=flops, transcendentals=transc,
                                      bytes_accessed=bytes_accessed),
    )(*inputs)


def encoder_forward(x, params, num_heads):
    out = x
    n_layers = len(params["layers"])
    for li, lp in enumerate(params["layers"]):
        pos = params["pos"] if li == 0 else None                       # fused pos-add
        final = (params["gf"], params["bf"]) if li == n_layers - 1 else None  # fused final LN
        qkv = ln1_qkv(out, lp, num_heads, pos=pos)
        out = attn_mlp(out, qkv, lp, num_heads, pos=pos, final_ln=final)
    return out


# ----------------------- parameter prep (done once) -------------------------
def prepare_params(raw, num_heads):
    D = raw["pos"].shape[-1]
    Hd = D // num_heads
    inv_scale = 1.0 / (Hd ** 0.5)           # attention scale folded into Wq / bq
    bf16 = jnp.bfloat16
    layers = []
    for p in raw["layers"]:
        w_qkv = jnp.concatenate([p["wq"] * inv_scale, p["wk"], p["wv"]],
                                axis=1).astype(bf16)                    # (D, 3D) bf16
        b_qkv = jnp.concatenate([p["bq"] * inv_scale, p["bk"], p["bv"]], axis=1)  # f32
        layers.append(dict(
            g1=p["g1"], b1=p["b1"],
            w_qkv=w_qkv, b_qkv=b_qkv,
            wo=p["wo"].astype(bf16), bo=p["bo"],
            g2=p["g2"], b2=p["b2"],
            w1=p["w1"].astype(bf16), bb1=p["bb1"],
            w2=p["w2"].astype(bf16), bb2=p["bb2"],
        ))
    return dict(pos=raw["pos"], layers=layers, gf=raw["gf"], bf=raw["bf"])


# --------------------------- pure-JAX reference -----------------------------
def _ln_ref(x, g, b):
    mu = jnp.mean(x, axis=-1, keepdims=True)
    var = jnp.mean((x - mu) ** 2, axis=-1, keepdims=True)
    return (x - mu) * lax.rsqrt(var + LN_EPS) * g + b


def encoder_ref(x, prep, num_heads):
    """Reference mirroring the kernel's precision (bf16 matmul inputs, f32 accumulation)."""
    bf16, f32 = jnp.bfloat16, jnp.float32
    B, S, D = x.shape
    Hd = D // num_heads
    out = x + prep["pos"]
    for p in prep["layers"]:
        res = out
        xn = _ln_ref(out, p["g1"][0], p["b1"][0])
        qkv = jnp.einsum("bsd,de->bse", xn.astype(bf16), p["w_qkv"],
                         preferred_element_type=f32) + p["b_qkv"][0]
        qkv = qkv.astype(bf16)
        q, k, v = qkv[..., :D], qkv[..., D:2 * D], qkv[..., 2 * D:]
        q = q.reshape(B, S, num_heads, Hd).transpose(0, 2, 1, 3)
        k = k.reshape(B, S, num_heads, Hd).transpose(0, 2, 1, 3)
        v = v.reshape(B, S, num_heads, Hd).transpose(0, 2, 1, 3)
        s = jnp.einsum("bhqe,bhke->bhqk", q, k, preferred_element_type=f32)
        a = jax.nn.softmax(s, axis=-1)
        o = jnp.einsum("bhqk,bhke->bhqe", a.astype(bf16), v, preferred_element_type=f32)
        o = o.transpose(0, 2, 1, 3).reshape(B, S, D)
        proj = jnp.einsum("bsd,de->bse", o.astype(bf16), p["wo"],
                          preferred_element_type=f32) + p["bo"][0]
        out = res + proj
        res = out
        xn2 = _ln_ref(out, p["g2"][0], p["b2"][0])
        h1 = jnp.einsum("bsd,dm->bsm", xn2.astype(bf16), p["w1"],
                        preferred_element_type=f32) + p["bb1"][0]
        h1 = jax.nn.gelu(h1, approximate=False)
        h2 = jnp.einsum("bsm,md->bsd", h1.astype(bf16), p["w2"],
                        preferred_element_type=f32) + p["bb2"][0]
        out = res + h2
    return _ln_ref(out, prep["gf"][0], prep["bf"][0])


# ------------------------------- param init ---------------------------------
def init_params(key, num_patches, emb_dim, mlp_dim, num_layers, num_heads):
    D, M = emb_dim, mlp_dim
    keys = jax.random.split(key, 1 + num_layers)
    pos = jax.random.normal(keys[0], (1, num_patches + 1, D), jnp.float32)
    sd = 1.0 / (D ** 0.5)
    layers = []
    for i in range(num_layers):
        ks = jax.random.split(keys[1 + i], 16)
        layers.append(dict(
            g1=1.0 + 0.1 * jax.random.normal(ks[0], (1, D), jnp.float32),
            b1=0.1 * jax.random.normal(ks[1], (1, D), jnp.float32),
            wq=sd * jax.random.normal(ks[2], (D, D), jnp.float32),
            bq=0.01 * jax.random.normal(ks[3], (1, D), jnp.float32),
            wk=sd * jax.random.normal(ks[4], (D, D), jnp.float32),
            bk=0.01 * jax.random.normal(ks[5], (1, D), jnp.float32),
            wv=sd * jax.random.normal(ks[6], (D, D), jnp.float32),
            bv=0.01 * jax.random.normal(ks[7], (1, D), jnp.float32),
            wo=sd * jax.random.normal(ks[8], (D, D), jnp.float32),
            bo=0.01 * jax.random.normal(ks[9], (1, D), jnp.float32),
            g2=1.0 + 0.1 * jax.random.normal(ks[10], (1, D), jnp.float32),
            b2=0.1 * jax.random.normal(ks[11], (1, D), jnp.float32),
            w1=sd * jax.random.normal(ks[12], (D, M), jnp.float32),
            bb1=0.01 * jax.random.normal(ks[13], (1, M), jnp.float32),
            w2=(1.0 / (M ** 0.5)) * jax.random.normal(ks[14], (M, D), jnp.float32),
            bb2=0.01 * jax.random.normal(ks[15], (1, D), jnp.float32),
        ))
    gf = jnp.ones((1, D), jnp.float32)
    bf = jnp.zeros((1, D), jnp.float32)
    return dict(pos=pos, layers=layers, gf=gf, bf=bf)


# ---------------------------------- main -------------------------------------
if __name__ == "__main__":
    # Small but consistent with Encoder: seq = num_patches + 1.
    num_patches, emb_dim, mlp_dim = 7, 32, 64
    num_layers, num_heads, batch = 2, 4, 2

    key = jax.random.PRNGKey(0)
    kx, kp = jax.random.split(key)
    x = jax.random.normal(kx, (batch, num_patches + 1, emb_dim), jnp.float32)
    raw = init_params(kp, num_patches, emb_dim, mlp_dim, num_layers, num_heads)
    params = prepare_params(raw, num_heads)

    out = jax.block_until_ready(encoder_forward(x, params, num_heads))

    ref = encoder_ref(x, params, num_heads)
    assert out.shape == ref.shape == (batch, num_patches + 1, emb_dim)
    err = float(jnp.max(jnp.abs(out - ref)))
    assert err < 3e-2, f"max abs err {err}"

    print("KERNEL_OK")
</pallas_src>

<mosaic_0001>
module attributes {stable_mosaic.version = 11 : i64} {
  func.func @_ln1_qkv_kernel(%arg0: i32, %arg1: i32, %arg2: memref<1x8x32xf32, #tpu.memory_space<vmem>>, %arg3: memref<1x8x32xf32, #tpu.memory_space<vmem>>, %arg4: memref<1x32xf32, #tpu.memory_space<vmem>>, %arg5: memref<1x32xf32, #tpu.memory_space<vmem>>, %arg6: memref<32x96xbf16, #tpu.memory_space<vmem>>, %arg7: memref<1x96xf32, #tpu.memory_space<vmem>>, %arg8: memref<1x3x8x32xbf16, #tpu.memory_space<vmem>>) attributes {dimension_semantics = [#tpu.dimension_semantics<parallel>, #tpu.dimension_semantics<parallel>], iteration_bounds = array<i64: 2, 1>, scalar_prefetch = 0 : i64, scratch_operands = 0 : i64, tpu.core_type = #tpu.core_type<tc>, window_params = [{transform_indices = @transform_0, window_bounds = array<i64: 1, 8, 32>}, {transform_indices = @transform_1, window_bounds = array<i64: 1, 8, 32>}, {pipeline_mode = #tpu.pipeline_mode<synchronous>, transform_indices = @transform_2, window_bounds = array<i64: 1, 32>}, {pipeline_mode = #tpu.pipeline_mode<synchronous>, transform_indices = @transform_3, window_bounds = array<i64: 1, 32>}, {pipeline_mode = #tpu.pipeline_mode<synchronous>, transform_indices = @transform_4, window_bounds = array<i64: 32, 96>}, {pipeline_mode = #tpu.pipeline_mode<synchronous>, transform_indices = @transform_5, window_bounds = array<i64: 1, 96>}, {transform_indices = @transform_6, window_bounds = array<i64: 1, 3, 8, 32>}]} {
    %c0 = arith.constant 0 : index
    %c0_0 = arith.constant 0 : index
    %c0_1 = arith.constant 0 : index
    %0 = vector.load %arg2[%c0, %c0_0, %c0_1] : memref<1x8x32xf32, #tpu.memory_space<vmem>>, vector<1x8x32xf32>
    %1 = vector.shape_cast %0 : vector<1x8x32xf32> to vector<8x32xf32>
    %c0_2 = arith.constant 0 : index
    %c0_3 = arith.constant 0 : index
    %c0_4 = arith.constant 0 : index
    %2 = vector.load %arg3[%c0_2, %c0_3, %c0_4] : memref<1x8x32xf32, #tpu.memory_space<vmem>>, vector<1x8x32xf32>
    %3 = vector.shape_cast %2 : vector<1x8x32xf32> to vector<8x32xf32>
    %4 = arith.addf %1, %3 : vector<8x32xf32>
    %c0_5 = arith.constant 0 : index
    %c0_6 = arith.constant 0 : index
    %5 = vector.load %arg4[%c0_5, %c0_6] : memref<1x32xf32, #tpu.memory_space<vmem>>, vector<1x32xf32>
    %6 = vector.shape_cast %5 : vector<1x32xf32> to vector<32xf32>
    %c0_7 = arith.constant 0 : index
    %c0_8 = arith.constant 0 : index
    %7 = vector.load %arg5[%c0_7, %c0_8] : memref<1x32xf32, #tpu.memory_space<vmem>>, vector<1x32xf32>
    %8 = vector.shape_cast %7 : vector<1x32xf32> to vector<32xf32>
    %cst = arith.constant dense<0.000000e+00> : vector<8xf32>
    %9 = vector.multi_reduction <add>, %4, %cst [1] : vector<8x32xf32> to vector<8xf32>
    %10 = vector.shape_cast %9 : vector<8xf32> to vector<8x1xf32>
    %cst_9 = arith.constant 3.200000e+01 : f32
    %11 = vector.broadcast %cst_9 : f32 to vector<8x1xf32>
    %12 = arith.divf %10, %11 : vector<8x1xf32>
    %13 = vector.broadcast %12 : vector<8x1xf32> to vector<8x32xf32>
    %14 = arith.subf %4, %13 : vector<8x32xf32>
    %15 = arith.mulf %14, %14 : vector<8x32xf32>
    %cst_10 = arith.constant dense<0.000000e+00> : vector<8xf32>
    %16 = vector.multi_reduction <add>, %15, %cst_10 [1] : vector<8x32xf32> to vector<8xf32>
    %17 = vector.shape_cast %16 : vector<8xf32> to vector<8x1xf32>
    %cst_11 = arith.constant 3.200000e+01 : f32
    %18 = vector.broadcast %cst_11 : f32 to vector<8x1xf32>
    %19 = arith.divf %17, %18 : vector<8x1xf32>
    %20 = vector.broadcast %12 : vector<8x1xf32> to vector<8x32xf32>
    %21 = arith.subf %4, %20 : vector<8x32xf32>
    %cst_12 = arith.constant 9.99999974E-6 : f32
    %22 = vector.broadcast %cst_12 : f32 to vector<8x1xf32>
    %23 = arith.addf %19, %22 : vector<8x1xf32>
    %24 = math.rsqrt %23 : vector<8x1xf32>
    %25 = vector.broadcast %24 : vector<8x1xf32> to vector<8x32xf32>
    %26 = arith.mulf %21, %25 : vector<8x32xf32>
    %27 = vector.shape_cast %6 : vector<32xf32> to vector<1x32xf32>
    %28 = vector.broadcast %27 : vector<1x32xf32> to vector<8x32xf32>
    %29 = arith.mulf %26, %28 : vector<8x32xf32>
    %30 = vector.shape_cast %8 : vector<32xf32> to vector<1x32xf32>
    %31 = vector.broadcast %30 : vector<1x32xf32> to vector<8x32xf32>
    %32 = arith.addf %29, %31 : vector<8x32xf32>
    %33 = arith.truncf %32 : vector<8x32xf32> to vector<8x32xbf16>
    %c0_13 = arith.constant 0 : index
    %c0_14 = arith.constant 0 : index
    %34 = vector.load %arg6[%c0_13, %c0_14] : memref<32x96xbf16, #tpu.memory_space<vmem>>, vector<32x96xbf16>
    %cst_15 = arith.constant dense<0.000000e+00> : vector<8x96xf32>
    %35 = tpu.matmul %33, %34, %cst_15 {dimension_numbers = #tpu.dot_dimension_numbers<[1], [0], [0], [1], [0, 0, 1, 1], [], []>} : vector<8x32xbf16>, vector<32x96xbf16>, vector<8x96xf32> -> vector<8x96xf32>
    %c0_16 = arith.constant 0 : index
    %c0_17 = arith.constant 0 : index
    %36 = vector.load %arg7[%c0_16, %c0_17] : memref<1x96xf32, #tpu.memory_space<vmem>>, vector<1x96xf32>
    %37 = vector.shape_cast %36 : vector<1x96xf32> to vector<96xf32>
    %38 = vector.shape_cast %37 : vector<96xf32> to vector<1x96xf32>
    %39 = vector.broadcast %38 : vector<1x96xf32> to vector<8x96xf32>
    %40 = arith.addf %35, %39 : vector<8x96xf32>
    %41 = arith.truncf %40 : vector<8x96xf32> to vector<8x96xbf16>
    %42 = vector.extract_strided_slice %41 {offsets = [0, 0], sizes = [8, 32], strides = [1, 1]} : vector<8x96xbf16> to vector<8x32xbf16>
    %c0_18 = arith.constant 0 : index
    %c0_19 = arith.constant 0 : index
    %c0_20 = arith.constant 0 : index
    %c0_21 = arith.constant 0 : index
    %43 = vector.load %arg8[%c0_18, %c0_19, %c0_20, %c0_21] : memref<1x3x8x32xbf16, #tpu.memory_space<vmem>>, vector<1x1x8x32xbf16>
    %44 = vector.shape_cast %43 : vector<1x1x8x32xbf16> to vector<8x32xbf16>
    %45 = vector.shape_cast %42 : vector<8x32xbf16> to vector<1x1x8x32xbf16>
    tpu.vector_store %arg8[%c0_18, %c0_19, %c0_20, %c0_21], %45 {strides = array<i32>} : memref<1x3x8x32xbf16, #tpu.memory_space<vmem>>, vector<1x1x8x32xbf16>,
    %46 = vector.extract_strided_slice %41 {offsets = [0, 32], sizes = [8, 32], strides = [1, 1]} : vector<8x96xbf16> to vector<8x32xbf16>
    %c0_22 = arith.constant 0 : index
    %c1 = arith.constant 1 : index
    %c0_23 = arith.constant 0 : index
    %c0_24 = arith.constant 0 : index
    %47 = vector.load %arg8[%c0_22, %c1, %c0_23, %c0_24] : memref<1x3x8x32xbf16, #tpu.memory_space<vmem>>, vector<1x1x8x32xbf16>
    %48 = vector.shape_cast %47 : vector<1x1x8x32xbf16> to vector<8x32xbf16>
    %49 = vector.shape_cast %46 : vector<8x32xbf16> to vector<1x1x8x32xbf16>
    tpu.vector_store %arg8[%c0_22, %c1, %c0_23, %c0_24], %49 {strides = array<i32>} : memref<1x3x8x32xbf16, #tpu.memory_space<vmem>>, vector<1x1x8x32xbf16>,
    %50 = vector.extract_strided_slice %41 {offsets = [0, 64], sizes = [8, 32], strides = [1, 1]} : vector<8x96xbf16> to vector<8x32xbf16>
    %c0_25 = arith.constant 0 : index
    %c2 = arith.constant 2 : index
    %c0_26 = arith.constant 0 : index
    %c0_27 = arith.constant 0 : index
    %51 = vector.load %arg8[%c0_25, %c2, %c0_26, %c0_27] : memref<1x3x8x32xbf16, #tpu.memory_space<vmem>>, vector<1x1x8x32xbf16>
    %52 = vector.shape_cast %51 : vector<1x1x8x32xbf16> to vector<8x32xbf16>
    %53 = vector.shape_cast %50 : vector<8x32xbf16> to vector<1x1x8x32xbf16>
    tpu.vector_store %arg8[%c0_25, %c2, %c0_26, %c0_27], %53 {strides = array<i32>} : memref<1x3x8x32xbf16, #tpu.memory_space<vmem>>, vector<1x1x8x32xbf16>,
    return
  }
  func.func @transform_0(%arg0: i32, %arg1: i32) -> (i32, i32, i32) {
    %c0_i32 = arith.constant 0 : i32
    %c0_i32_0 = arith.constant 0 : i32
    return %arg0, %arg1, %c0_i32 : i32, i32, i32
  }
  func.func @transform_1(%arg0: i32, %arg1: i32) -> (i32, i32, i32) {
    %c0_i32 = arith.constant 0 : i32
    %c0_i32_0 = arith.constant 0 : i32
    %c0_i32_1 = arith.constant 0 : i32
    return %c0_i32, %arg1, %c0_i32_0 : i32, i32, i32
  }
  func.func @transform_2(%arg0: i32, %arg1: i32) -> (i32, i32) {
    %c0_i32 = arith.constant 0 : i32
    %c0_i32_0 = arith.constant 0 : i32
    %c0_i32_1 = arith.constant 0 : i32
    return %c0_i32, %c0_i32_0 : i32, i32
  }
  func.func @transform_3(%arg0: i32, %arg1: i32) -> (i32, i32) {
    %c0_i32 = arith.constant 0 : i32
    %c0_i32_0 = arith.constant 0 : i32
    %c0_i32_1 = arith.constant 0 : i32
    return %c0_i32, %c0_i32_0 : i32, i32
  }
  func.func @transform_4(%arg0: i32, %arg1: i32) -> (i32, i32) {
    %c0_i32 = arith.constant 0 : i32
    %c0_i32_0 = arith.constant 0 : i32
    %c0_i32_1 = arith.constant 0 : i32
    return %c0_i32, %c0_i32_0 : i32, i32
  }
  func.func @transform_5(%arg0: i32, %arg1: i32) -> (i32, i32) {
    %c0_i32 = arith.constant 0 : i32
    %c0_i32_0 = arith.constant 0 : i32
    %c0_i32_1 = arith.constant 0 : i32
    return %c0_i32, %c0_i32_0 : i32, i32
  }
  func.func @transform_6(%arg0: i32, %arg1: i32) -> (i32, i32, i32, i32) {
    %c0_i32 = arith.constant 0 : i32
    %c0_i32_0 = arith.constant 0 : i32
    %c0_i32_1 = arith.constant 0 : i32
    return %arg0, %c0_i32, %arg1, %c0_i32_0 : i32, i32, i32, i32
  }
}

</mosaic_0001>

<llo_original>
// kernel: tpu_custom_call.1
$region0: #{tpu_custom_call.1}
  #allocation0 [shape = 'u32[]', space=smem, size = 0x4, offset = 0x4, fixed_abs, tag = 'smem constant byte address 0x4 - core index']
  #allocation1 [shape = 'u32[72,128]{1,0:T(1,128)}', space=vmem, size = 0x9000, scoped, tag = 'internal scratch']
  %s0 = inlined_call_operand.hbm [shape: f32[2,8,32], index: 0, kind: input, shape index: {}]
  %s1 = inlined_call_operand.hbm [shape: f32[1,8,32], index: 1, kind: input, shape index: {}]
  %s2 = inlined_call_operand.vmem [shape: f32[1,32], index: 2, kind: input, shape index: {}]
  %s3 = inlined_call_operand.vmem [shape: f32[1,32], index: 3, kind: input, shape index: {}]
  %s4 = inlined_call_operand.hbm [shape: bf16[32,96], index: 4, kind: input, shape index: {}]
  %s5 = inlined_call_operand.vmem [shape: f32[1,96], index: 5, kind: input, shape index: {}]
  %s6 = inlined_call_operand.hbm [shape: bf16[2,3,8,32], index: 6, kind: output, shape index: {}]
  %s7 = sld [smem:[#allocation0]]
  $region69: #{tpu_custom_call.1} parent=0
    _
  %s9 = ssub.s32 1, %s7
  %s10 = scalar_select 0, %s9, %s7
  $region1: #{tpu_custom_call.1} parent=0
    #allocation2 [shape = 'u8[8192]{0}', space=vmem, size = 0x2000, scoped, tag = 'input window, operand 0']
    #allocation3 [shape = 's32[2]{0}', space=sflag, size = 0x8, scoped, tag = 'scoped memory for tpu_custom_call.1']
    #allocation4 [shape = 's32[2]{0}', space=sflag, size = 0x8, scoped, tag = 'scoped memory for tpu_custom_call.1']
    #allocation5 [shape = 'u8[4096]{0}', space=vmem, size = 0x1000, scoped, tag = 'input window, operand 1, single buffered']
    #allocation6 [shape = 's32[1]{0}', space=sflag, size = 0x4, scoped, tag = 'scoped memory for tpu_custom_call.1']
    #allocation7 [shape = 'u8[8192]{0}', space=vmem, size = 0x2000, scoped, tag = 'input window, operand 4, single buffered']
    #allocation8 [shape = 'u8[12288]{0}', space=vmem, size = 0x3000, scoped, tag = 'output window, operand 0']
    %11 = vsyncpa [#allocation3], 0
    %s12 = scalar_lea.sflag [#allocation3], 1
    %13 = vsyncpa %s12, 0
    %14 = vsyncpa [#allocation6], 0
    %15 = vsyncpa [#allocation4], 0
    %s16 = scalar_lea.sflag [#allocation4], 1
    %17 = vsyncpa %s16, 0
    loop: start=0, step=1, limit=4
    $region2: #{tpu_custom_call.1} parent=1 // loop_pre_header
      _
    $region3: #{tpu_custom_call.1} parent=1 // loop_header
      %s19 = sphi 0, %s23
      %p20 = scmp.ge.s32.totalorder %s19, 4
      %s26 = sphi 0, %s38
      %s27 = sphi 0, %s34
      %s28 = sphi 0, %s26
      %s29 = sphi 0, %s27
      %s30 = sphi 0, %s28
      %s31 = sphi 0, %s29
      %s43 = sphi 0, %s45
      %s46 = sphi 0, %s43
      %s47 = sphi 0, %s46
      %s63 = sphi 0, %s47
      %s69 = sphi 0, %s71
      %s72 = sphi 0, %s69
      %s73 = sphi 0, %s72
      %s89 = sphi 0, %s73
      %s93 = sphi 0, %s93
      %s95 = sphi 0, %s93
      %s96 = sphi 0, %s95
      %s110 = sphi 0, %s96
      %s114 = sphi 0, %s114
      %s116 = sphi 0, %s114
      %s117 = sphi 0, %s116
      %s131 = sphi 0, %s117
      %s135 = sphi 0, %s135
      %s137 = sphi 0, %s135
      %s138 = sphi 0, %s137
      %s152 = sphi 0, %s138
      %s156 = sphi 0, %s156
      %s158 = sphi 0, %s156
      %s159 = sphi 0, %s158
      %s173 = sphi 0, %s159
      %s181 = sphi 0, %s183
      %s184 = sphi 0, %s181
      %s185 = sphi 0, %s184
      %s201 = sphi 0, %s185
    $region4: #{tpu_custom_call.1} parent=1 // loop_header_branch
      %22 = sbr.rel (%p20) target = $region8
    $region5: #{tpu_custom_call.1} parent=1 // loop_body
      %s24 = ssub.s32 %s19, 1
      %s25 = ssub.s32 %s19, 2
      %s32 = sadd.s32 1, %s27
      %p33 = scmp.ge.s32.totalorder %s32, 1
      %s34 = scalar_select %p33, 0, %s32
      %s35 = sadd.s32 1, %s26
      %s36 = scalar_select %p33, %s35, %s26
      %p37 = scmp.ge.s32.totalorder %s36, 2
      %s38 = scalar_select %p37, 0, %s36
      %s39 = ssub.s32 %s26, %s38
      %s40 = ssub.s32 %s27, %s34
      %s41 = sor.u32 %s39, %s40
      %p42 = scmp.eq.s32.totalorder %s41, 0
      %s44 = sadd.s32 %s43, 1
      %s45 = scalar_select %p42, %s43, %s44
      %p48 = pneg %p42
      %p49 = scmp.eq.s32.totalorder %s19, 1
      %p50 = por %p48, %p49
      %p51 = scmp.ne.s32.totalorder %s43, %s46
      %p52 = scmp.eq.s32.totalorder %s19, 0
      %p53 = por %p51, %p52
      %p54 = scmp.ne.s32.totalorder %s43, %s46
      %p55 = scmp.eq.s32.totalorder %s24, 1
      %p56 = por %p54, %p55
      %p57 = scmp.ne.s32.totalorder %s46, %s47
      %p58 = scmp.eq.s32.totalorder %s24, 0
      %p59 = por %p57, %p58
      %p60 = scmp.ne.s32.totalorder %s46, %s47
      %p61 = scmp.eq.s32.totalorder %s25, 1
      %p62 = por %p60, %p61
      %p64 = scmp.ne.s32.totalorder %s47, %s63
      %p65 = scmp.eq.s32.totalorder %s25, 0
      %p66 = por %p64, %p65
      %s67 = ssub.s32 %s27, %s34
      %p68 = scmp.eq.s32.totalorder %s67, 0
      %s70 = sadd.s32 %s69, 1
      %s71 = scalar_select %p68, %s69, %s70
      %p74 = pneg %p68
      %p75 = scmp.eq.s32.totalorder %s19, 1
      %p76 = por %p74, %p75
      %p77 = scmp.ne.s32.totalorder %s69, %s72
      %p78 = scmp.eq.s32.totalorder %s19, 0
      %p79 = por %p77, %p78
      %p80 = scmp.ne.s32.totalorder %s69, %s72
      %p81 = scmp.eq.s32.totalorder %s24, 1
      %p82 = por %p80, %p81
      %p83 = scmp.ne.s32.totalorder %s72, %s73
      %p84 = scmp.eq.s32.totalorder %s24, 0
      %p85 = por %p83, %p84
      %p86 = scmp.ne.s32.totalorder %s72, %s73
      %p87 = scmp.eq.s32.totalorder %s25, 1
      %p88 = por %p86, %p87
      %p90 = scmp.ne.s32.totalorder %s73, %s89
      %p91 = scmp.eq.s32.totalorder %s25, 0
      %p92 = por %p90, %p91
      %s94 = sadd.s32 %s93, 1
      %p97 = scmp.eq.s32.totalorder %s19, 1
      %p98 = scmp.ne.s32.totalorder %s93, %s95
      %p99 = scmp.eq.s32.totalorder %s19, 0
      %p100 = por %p98, %p99
      %p101 = scmp.ne.s32.totalorder %s93, %s95
      %p102 = scmp.eq.s32.totalorder %s24, 1
      %p103 = por %p101, %p102
      %p104 = scmp.ne.s32.totalorder %s95, %s96
      %p105 = scmp.eq.s32.totalorder %s24, 0
      %p106 = por %p104, %p105
      %p107 = scmp.ne.s32.totalorder %s95, %s96
      %p108 = scmp.eq.s32.totalorder %s25, 1
      %p109 = por %p107, %p108
      %p111 = scmp.ne.s32.totalorder %s96, %s110
      %p112 = scmp.eq.s32.totalorder %s25, 0
      %p113 = por %p111, %p112
      %s115 = sadd.s32 %s114, 1
      %p118 = scmp.eq.s32.totalorder %s19, 1
      %p119 = scmp.ne.s32.totalorder %s114, %s116
      %p120 = scmp.eq.s32.totalorder %s19, 0
      %p121 = por %p119, %p120
      %p122 = scmp.ne.s32.totalorder %s114, %s116
      %p123 = scmp.eq.s32.totalorder %s24, 1
      %p124 = por %p122, %p123
      %p125 = scmp.ne.s32.totalorder %s116, %s117
      %p126 = scmp.eq.s32.totalorder %s24, 0
      %p127 = por %p125, %p126
      %p128 = scmp.ne.s32.totalorder %s116, %s117
      %p129 = scmp.eq.s32.totalorder %s25, 1
      %p130 = por %p128, %p129
      %p132 = scmp.ne.s32.totalorder %s117, %s131
      %p133 = scmp.eq.s32.totalorder %s25, 0
      %p134 = por %p132, %p133
      %s136 = sadd.s32 %s135, 1
      %p139 = scmp.eq.s32.totalorder %s19, 1
      %p140 = scmp.ne.s32.totalorder %s135, %s137
      %p141 = scmp.eq.s32.totalorder %s19, 0
      %p142 = por %p140, %p141
      %p143 = scmp.ne.s32.totalorder %s135, %s137
      %p144 = scmp.eq.s32.totalorder %s24, 1
      %p145 = por %p143, %p144
      %p146 = scmp.ne.s32.totalorder %s137, %s138
      %p147 = scmp.eq.s32.totalorder %s24, 0
      %p148 = por %p146, %p147
      %p149 = scmp.ne.s32.totalorder %s137, %s138
      %p150 = scmp.eq.s32.totalorder %s25, 1
      %p151 = por %p149, %p150
      %p153 = scmp.ne.s32.totalorder %s138, %s152
      %p154 = scmp.eq.s32.totalorder %s25, 0
      %p155 = por %p153, %p154
      %s157 = sadd.s32 %s156, 1
      %p160 = scmp.eq.s32.totalorder %s19, 1
      %p161 = scmp.ne.s32.totalorder %s156, %s158
      %p162 = scmp.eq.s32.totalorder %s19, 0
      %p163 = por %p161, %p162
      %p164 = scmp.ne.s32.totalorder %s156, %s158
      %p165 = scmp.eq.s32.totalorder %s24, 1
      %p166 = por %p164, %p165
      %p167 = scmp.ne.s32.totalorder %s158, %s159
      %p168 = scmp.eq.s32.totalorder %s24, 0
      %p169 = por %p167, %p168
      %p170 = scmp.ne.s32.totalorder %s158, %s159
      %p171 = scmp.eq.s32.totalorder %s25, 1
      %p172 = por %p170, %p171
      %p174 = scmp.ne.s32.totalorder %s159, %s173
      %p175 = scmp.eq.s32.totalorder %s25, 0
      %p176 = por %p174, %p175
      %s177 = ssub.s32 %s26, %s38
      %s178 = ssub.s32 %s27, %s34
      %s179 = sor.u32 %s177, %s178
      %p180 = scmp.eq.s32.totalorder %s179, 0
      %s182 = sadd.s32 %s181, 1
      %s183 = scalar_select %p180, %s181, %s182
      %p186 = pneg %p180
      %p187 = scmp.eq.s32.totalorder %s19, 1
      %p188 = por %p186, %p187
      %p189 = scmp.ne.s32.totalorder %s181, %s184
      %p190 = scmp.eq.s32.totalorder %s19, 0
      %p191 = por %p189, %p190
      %p192 = scmp.ne.s32.totalorder %s181, %s184
      %p193 = scmp.eq.s32.totalorder %s24, 1
      %p194 = por %p192, %p193
      %p195 = scmp.ne.s32.totalorder %s184, %s185
      %p196 = scmp.eq.s32.totalorder %s24, 0
      %p197 = por %p195, %p196
      %p198 = scmp.ne.s32.totalorder %s184, %s185
      %p199 = scmp.eq.s32.totalorder %s25, 1
      %p200 = por %p198, %p199
      %p202 = scmp.ne.s32.totalorder %s185, %s201
      %p203 = scmp.eq.s32.totalorder %s25, 0
      %p204 = por %p202, %p203
      %p205 = scmp.le.s32.totalorder 1, %s19
      %p206 = scmp.lt.s32.totalorder %s19, 3
      %p207 = pnand %p205, %p206
      %p208 = pneg %p207
      // Predicated region
      $region9: #{tpu_custom_call.1} parent=5 // pred_check
        _
      $region10: #{tpu_custom_call.1} parent=5 // pred_check_branch
        %210 = sbr.rel (%p207) target = $region12
      $region11: #{tpu_custom_call.1} parent=5 // pred_region
        %s211 = ssub.s32 %s19, 1
        // Predicated region
        $region13: #{tpu_custom_call.1} parent=11 // pred_check
          %p212 = pneg %p85
        $region14: #{tpu_custom_call.1} parent=11 // pred_check_branch
          %214 = sbr.rel (%p212) target = $region16
        $region15: #{tpu_custom_call.1} parent=11 // pred_region
          %216 = vsyncadd [#allocation6], 0
          %s217 = smul.addr %s29, 8
          %s218 = scalar_lea.hbm %s1, %s217
          %s220 = sshll.u32 %s218, 4
          %s221 = int_to_ptr.hbm [resolvable:$true] %s220
          %s222 = sshll.u32 [#allocation5], 4
          %s223 = int_to_ptr.vmem [resolvable:$true] %s222
          %225 = dma.hbm_to_vmem [thread:$0]  %s221, 128, %s223, [#allocation6]
        $region16: #{tpu_custom_call.1} parent=11 // pred_fallthru
          _
        // Predicated region
        $region17: #{tpu_custom_call.1} parent=11 // pred_check
          %p226 = pneg %p106
        $region18: #{tpu_custom_call.1} parent=11 // pred_check_branch
          %228 = sbr.rel (%p226) target = $region20
        $region19: #{tpu_custom_call.1} parent=11 // pred_region
          _
        $region20: #{tpu_custom_call.1} parent=11 // pred_fallthru
          _
        // Predicated region
        $region21: #{tpu_custom_call.1} parent=11 // pred_check
          %p229 = pneg %p127
        $region22: #{tpu_custom_call.1} parent=11 // pred_check_branch
          %231 = sbr.rel (%p229) target = $region24
        $region23: #{tpu_custom_call.1} parent=11 // pred_region
          _
        $region24: #{tpu_custom_call.1} parent=11 // pred_fallthru
          _
        // Predicated region
        $region25: #{tpu_custom_call.1} parent=11 // pred_check
          %p232 = pneg %p148
        $region26: #{tpu_custom_call.1} parent=11 // pred_check_branch
          %234 = sbr.rel (%p232) target = $region28
        $region27: #{tpu_custom_call.1} parent=11 // pred_region
          %236 = vsyncadd [#allocation6], 0
          %s237 = sshll.u32 %s4, 4
          %s238 = int_to_ptr.hbm [resolvable:$true] %s237
          %s239 = sshll.u32 [#allocation7], 4
          %s240 = int_to_ptr.vmem [resolvable:$true] %s239
          %245 = dma.hbm_to_vmem [thread:$0]  %s238, 256, %s240, [#allocation6], 64, 64, 4
        $region28: #{tpu_custom_call.1} parent=11 // pred_fallthru
          _
        // Predicated region
        $region29: #{tpu_custom_call.1} parent=11 // pred_check
          %p246 = pneg %p169
        $region30: #{tpu_custom_call.1} parent=11 // pred_check_branch
          %248 = sbr.rel (%p246) target = $region32
        $region31: #{tpu_custom_call.1} parent=11 // pred_region
          _
        $region32: #{tpu_custom_call.1} parent=11 // pred_fallthru
          _
      $region12: #{tpu_custom_call.1} parent=5 // pred_fallthru
        _
      %p249 = scmp.lt.s32.totalorder %s19, 2
      // Predicated region
      $region33: #{tpu_custom_call.1} parent=5 // pred_check
        %p250 = pneg %p249
      $region34: #{tpu_custom_call.1} parent=5 // pred_check_branch
        %252 = sbr.rel (%p250) target = $region36
      $region35: #{tpu_custom_call.1} parent=5 // pred_region
        // Predicated region
        $region37: #{tpu_custom_call.1} parent=35 // pred_check
          %p253 = pneg %p53
        $region38: #{tpu_custom_call.1} parent=35 // pred_check_branch
          %255 = sbr.rel (%p253) target = $region40
        $region39: #{tpu_custom_call.1} parent=35 // pred_region
          %s256 = sand.u32 %s43, 1
          %s257 = scalar_lea.sflag [#allocation3], %s256
          %s258 = sand.u32 %s43, 1
          %s259 = smul.addr %s258, 8
          %s260 = scalar_lea.vmem [#allocation2], %s259
          %262 = vsyncadd %s257, 0
          %s263 = sadd.s32 %s27, %s26
          %s264 = smul.addr %s263, 8
          %s265 = scalar_lea.hbm %s0, %s264
          %s267 = sshll.u32 %s265, 4
          %s268 = int_to_ptr.hbm [resolvable:$true] %s267
          %s269 = sshll.u32 %s260, 4
          %s270 = int_to_ptr.vmem [resolvable:$true] %s269
          %272 = dma.hbm_to_vmem [thread:$0]  %s268, 128, %s270, %s257
        $region40: #{tpu_custom_call.1} parent=35 // pred_fallthru
          _
      $region36: #{tpu_custom_call.1} parent=5 // pred_fallthru
        _
      %p273 = scmp.le.s32.totalorder 1, %s19
      %p274 = scmp.lt.s32.totalorder %s19, 3
      %p275 = pnand %p273, %p274
      %p276 = pneg %p275
      // Predicated region
      $region41: #{tpu_custom_call.1} parent=5 // pred_check
        _
      $region42: #{tpu_custom_call.1} parent=5 // pred_check_branch
        %278 = sbr.rel (%p275) target = $region44
      $region43: #{tpu_custom_call.1} parent=5 // pred_region
        %s279 = ssub.s32 %s19, 1
        %s280 = sand.u32 %s46, 1
        %s281 = scalar_lea.sflag [#allocation3], %s280
        %s282 = sand.u32 %s46, 1
        %s283 = smul.addr %s282, 8
        %s284 = scalar_lea.vmem [#allocation2], %s283
        // Predicated region
        $region45: #{tpu_custom_call.1} parent=43 // pred_check
          %p285 = pneg %p59
        $region46: #{tpu_custom_call.1} parent=43 // pred_check_branch
          %287 = sbr.rel (%p285) target = $region48
        $region47: #{tpu_custom_call.1} parent=43 // pred_region
          %289 = dma.done %s281, 128
        $region48: #{tpu_custom_call.1} parent=43 // pred_fallthru
          _
        // Predicated region
        $region49: #{tpu_custom_call.1} parent=43 // pred_check
          %p290 = pneg %p85
        $region50: #{tpu_custom_call.1} parent=43 // pred_check_branch
          %292 = sbr.rel (%p290) target = $region52
        $region51: #{tpu_custom_call.1} parent=43 // pred_region
          %294 = dma.done [#allocation6], 128
        $region52: #{tpu_custom_call.1} parent=43 // pred_fallthru
          _
        // Predicated region
        $region53: #{tpu_custom_call.1} parent=43 // pred_check
          %p295 = pneg %p148
        $region54: #{tpu_custom_call.1} parent=43 // pred_check_branch
          %297 = sbr.rel (%p295) target = $region56
        $region55: #{tpu_custom_call.1} parent=43 // pred_region
          %299 = dma.done [#allocation6], 256
        $region56: #{tpu_custom_call.1} parent=43 // pred_fallthru
          _
        %s300 = sand.u32 %s46, 1
        %s301 = scalar_lea.sflag [#allocation3], %s300
        %s302 = sand.u32 %s46, 1
        %s303 = smul.addr %s302, 8
        %s304 = scalar_lea.vmem [#allocation2], %s303
        %p305 = pneg %p59
        %p306 = pneg %p56
        %p307 = pneg %p85
        %p308 = pneg %p82
        %p309 = pneg %p106
        %p310 = pneg %p103
        %p311 = pneg %p127
        %p312 = pneg %p124
        %p313 = pneg %p148
        %p314 = pneg %p145
        %p315 = pneg %p169
        %p316 = pneg %p166
        %p317 = pneg %p197
        %p318 = pneg %p194
        %s319 = sand.u32 %s184, 1
        %s320 = scalar_lea.sflag [#allocation4], %s319
        %s321 = sand.u32 %s184, 1
        %s322 = smul.addr %s321, 12
        %s323 = scalar_lea.vmem [#allocation8], %s322
        %v325 = vld [vmem:[%s284] sm:$0xff]
        %v326 = vld [vmem:[#allocation5] sm:$0xff]
        %v327 = vadd.f32 %v325, %v326
        %v328 = vld [vmem:[%s2] sm:$0x1]
        %v329 = vld [vmem:[%s3] sm:$0x1]
        %vm330 = vcmask 261120
        %v331 = vsel %vm330, %v327, 0.0
        %332 = vadd.xlane.f32.xlu0 %v331
        %v333 = vpop.xlane.xlu0 %332
        %v334 = vrcp.pop 32.0
        %v335 = vmul.f32 32.0, %v334
        %v336 = vsub.f32 1.0, %v335
        %v337 = vmul.f32 %v334, %v336
        %v338 = vadd.f32 %v334, %v337
        %vm339 = vweird.f32 %v334
        %v340 = vsel %vm339, %v334, %v338
        %v341 = vmul.f32 %v333, %v340
        %v342 = vsub.f32 %v327, %v341
        %v343 = vmul.f32 %v342, %v342
        %v344 = vsel %vm330, %v343, 0.0
        %345 = vadd.xlane.f32.xlu0 %v344
        %v346 = vpop.xlane.xlu0 %345
        %v347 = vmul.f32 %v346, %v340
        %v348 = vadd.f32 %v347, 1e-05
        %v349 = vrsqrt.pop %v348
        %v350 = vmul.f32 %v349, %v348
        %v351 = vmul.f32 %v350, %v349
        %v352 = vmul.f32 0.5, %v351
        %v353 = vsub.f32 1.5, %v352
        %v354 = vmul.f32 %v349, %v353
        %vm355 = vweird.f32 %v348
        %vm356 = vweird.f32 %v349
        %vm357 = vmor %vm355, %vm356
        %v358 = vsel %vm357, %v349, %v354
        %v359 = vmul.f32 %v342, %v358
        %v361 = vperm.slane %v328, 0
        %v363 = vmul.f32 %v359, %v361
        %v365 = vperm.slane %v329, 0
        %v367 = vadd.f32 %v363, %v365
        %v368 = vpack.c.bf16 %v367, %v367
        %v369 = vld [vmem:[#allocation7] sm:$0xf]
        %v370 = vld [vmem:[#allocation7 + $0x4] sm:$0xf]
        %v371 = vld [vmem:[#allocation7 + $0x8] sm:$0xf]
        %v372 = vld [vmem:[#allocation7 + $0xc] sm:$0xf]
        %v373 = vld [vmem:[%s5] sm:$0x1]
        %v375 = vperm.slane %v373, 0
        %v381 = vunpack.c.l.b16 %v369
        %v382 = vunpack.c.l.b16 %v370
        %v383 = vunpack.c.l.b16 %v371
        %v384 = vunpack.c.l.b16 %v372
        %v385 = vpack.c.b16 %v382, %v381
        %v386 = vpack.c.b16 %v384, %v383
        %v390 = vsel %vm330, %v368, 0
        %392 = vmatpush.bf16.msra.mxu0 0
        %393 = vmatpush.bf16.msra.mxu0 0
        %394 = vmatpush.bf16.msra.mxu0 0
        %395 = vmatpush.bf16.msra.mxu0 0
        %396 = vmatpush.bf16.msra.mxu0 0
        %397 = vmatpush.bf16.msra.mxu0 0
        %398 = vmatpush.bf16.msra.mxu0 %v386
        %399 = vmatpush.bf16.msra.mxu0 %v385
        %400 = vmatmul.bf16.gmra.mxu0 %v390
        %v401 = vpop.f32.mrf.mxu0
        %v402 = vadd.f32 %v375, %v401
        %v403 = vpop.f32.mrf.mxu0
        %404 = vdwg.mxu0
        %v405 = vpack.c.bf16 %v402, %v402
        %vm406 = vcmask 257024
        %407 = vst.msk [vmem:[%s323] sm:$0xf] %vm406, %v405
        %409 = vrot.lane.b32.xlu0 %v405, 96
        %v410 = vpop.permute.xlu0 %409
        %s412 = scalar_lea.vmem %s323, 4 [#allocation8]
        %413 = vst.msk [vmem:[%s412] sm:$0xf] %vm406, %v410
        %414 = vrot.lane.b32.xlu0 %v405, 64
        %v415 = vpop.permute.xlu0 %414
        %s417 = scalar_lea.vmem %s323, 8 [#allocation8]
        %418 = vst.msk [vmem:[%s417] sm:$0xf] %vm406, %v415
        %s419 = sand.u32 %s184, 1
        %s420 = scalar_lea.sflag [#allocation4], %s419
        %s421 = sand.u32 %s184, 1
        %s422 = smul.addr %s421, 12
        %s423 = scalar_lea.vmem [#allocation8], %s422
        // Predicated region
        $region57: #{tpu_custom_call.1} parent=43 // pred_check
          %p424 = pneg %p194
        $region58: #{tpu_custom_call.1} parent=43 // pred_check_branch
          %426 = sbr.rel (%p424) target = $region60
        $region59: #{tpu_custom_call.1} parent=43 // pred_region
          %428 = vsyncadd %s420, 0
          %s429 = smul.addr %s28, 3
          %s430 = sadd.s32 %s29, %s429
          %s431 = smul.addr %s430, 4
          %s432 = scalar_lea.hbm %s6, %s431
          %s433 = sshll.u32 %s423, 4
          %s434 = int_to_ptr.vmem [resolvable:$true] %s433
          %s435 = sshll.u32 %s432, 4
          %s436 = int_to_ptr.hbm [resolvable:$true] %s435
          %441 = dma.vmem_to_hbm [thread:$0]  %s434, 192, %s436, %s420, 64, 64, 4
        $region60: #{tpu_custom_call.1} parent=43 // pred_fallthru
          _
      $region44: #{tpu_custom_call.1} parent=5 // pred_fallthru
        _
      %p442 = scmp.le.s32.totalorder 2, %s19
      // Predicated region
      $region61: #{tpu_custom_call.1} parent=5 // pred_check
        %p443 = pneg %p442
      $region62: #{tpu_custom_call.1} parent=5 // pred_check_branch
        %445 = sbr.rel (%p443) target = $region64
      $region63: #{tpu_custom_call.1} parent=5 // pred_region
        %s446 = ssub.s32 %s19, 2
        // Predicated region
        $region65: #{tpu_custom_call.1} parent=63 // pred_check
          %p447 = pneg %p200
        $region66: #{tpu_custom_call.1} parent=63 // pred_check_branch
          %449 = sbr.rel (%p447) target = $region68
        $region67: #{tpu_custom_call.1} parent=63 // pred_region
          %s450 = sand.u32 %s185, 1
          %s451 = scalar_lea.sflag [#allocation4], %s450
          %s452 = sand.u32 %s185, 1
          %s453 = smul.addr %s452, 12
          %s454 = scalar_lea.vmem [#allocation8], %s453
          %456 = dma.done %s451, 192
        $region68: #{tpu_custom_call.1} parent=63 // pred_fallthru
          _
      $region64: #{tpu_custom_call.1} parent=5 // pred_fallthru
        _
    $region6: #{tpu_custom_call.1} parent=1 // loop_footer
      %s23 = sadd.s32 1, %s19
    $region7: #{tpu_custom_call.1} parent=1 // loop_footer_branch
      %18 = sbr.rel target = $region3
    $region8: #{tpu_custom_call.1} parent=1 // loop_exit
      _
    %457 = vsyncpa [#allocation3], 1
    %s458 = scalar_lea.sflag [#allocation3], 1
    %459 = vsyncpa %s458, 1
    %460 = vsyncpa [#allocation6], 1
    %461 = vsyncpa [#allocation4], 1
    %s462 = scalar_lea.sflag [#allocation4], 1
    %463 = vsyncpa %s462, 1

</llo_original>
